<compile_context>
chip_gen: v5e
topology: v5e:2x2
jax: 0.10.0
libtpu: 0.0.40
codegen_flags: <defaults>
</compile_context>

<pallas_src>
import jax
import jax.numpy as jnp
from jax import lax
from jax.experimental import pallas as pl
from jax.experimental.pallas import tpu as pltpu


def _mlp_kernel(x_ref, w1t_ref, b1_ref, w2t_ref, b2_ref, w3_ref, b3_ref, o_ref):
    # x tile (TB, F) arrives in its native dtype; cast to bf16 here (hidden
    # under the DMA) for the MXU matmuls.
    x_bf = x_ref[...].astype(jnp.bfloat16)

    # Layer 1, feature-major: (64, F) contracted with (TB, F) over F -> (64, TB).
    # Batch lands on the 128-lane axis -> lane-dense intermediates.
    h1 = lax.dot_general(w1t_ref[...], x_bf,
                         dimension_numbers=(((1,), (1,)), ((), ())),
                         preferred_element_type=jnp.float32)        # (64, TB) f32
    h1 = jnp.maximum(h1 + b1_ref[...], 0.0)                         # bias (64,1)

    # Layer 2: (32, 64) · (64, TB) -> (32, TB).
    h2 = jnp.dot(w2t_ref[...], h1.astype(jnp.bfloat16),
                 preferred_element_type=jnp.float32)                # (32, TB) f32
    h2 = jnp.maximum(h2 + b2_ref[...], 0.0)                         # bias (32,1)

    # Layer 3 on VPU + XLU (not the MXU: M=1 would waste a weight-tile push):
    # broadcast-multiply by w3 (32,1) and reduce the 32 sublanes -> (1, TB).
    out = jnp.sum(h2 * w3_ref[...], axis=0, keepdims=True) + b3_ref[...]
    o_ref[...] = out.astype(o_ref.dtype)                            # lane-dense store


def _round_up(a, m):
    return (a + m - 1) // m * m


def _pick_tb(B, F, tb_max, *, x_itemsize=4, vmem_budget=8 << 20):
    """Batch tile: multiple of 128, under the VMEM budget, >=2 grid steps when possible."""
    f_pad = max(_round_up(F, 128), 128)                 # lane-padded x block width
    # double-buffered x blocks: 2 * TB * f_pad * itemsize <= budget
    cap = max((vmem_budget // (2 * f_pad * x_itemsize)) // 128 * 128, 128)
    # keep >=2 grid steps for large B so both v7x TensorCores get work
    two_step = max(_round_up(pl.cdiv(B, 2), 128), 128)
    tb = min(tb_max, cap, two_step)
    return max(tb // 128 * 128, 128)                    # floor to 128-multiple, >=128


def task_predictor_forward(x, params, *, tb_max=4096):
    """x: (B, input_size). params: w1,b1,w2,b2,w3,b3 in (in, out) layout."""
    w1, b1, w2, b2, w3, b3 = (params["w1"], params["b1"], params["w2"],
                              params["b2"], params["w3"], params["b3"])
    B, F = x.shape

    TB = _pick_tb(B, F, tb_max, x_itemsize=x.dtype.itemsize)
    grid = (pl.cdiv(B, TB),)                            # partial last block is masked

    # Tiny, one-time operand prep (feature-major weights, column biases).
    w1t = w1.T.astype(jnp.bfloat16)                     # (64, F)
    w2t = w2.T.astype(jnp.bfloat16)                     # (32, 64)
    b1c = b1.reshape(64, 1)
    b2c = b2.reshape(32, 1)
    w3c = w3.reshape(32, 1)                             # stays f32, used on the VPU
    b3c = b3.reshape(1, 1)

    # Weights / biases: constant block index -> fetched once, VMEM-resident.
    resident = lambda a: pl.BlockSpec(a.shape, lambda i: (0,) * a.ndim)

    flops = 2 * B * (F * 64 + 64 * 32 + 32)
    bytes_accessed = (B * F * x.dtype.itemsize          # x read
                      + B * 4                           # output write
                      + w1t.size * 2 + w2t.size * 2
                      + (b1c.size + b2c.size + w3c.size + b3c.size) * 4)

    out_row = pl.pallas_call(
        _mlp_kernel,
        out_shape=jax.ShapeDtypeStruct((1, B), jnp.float32),
        grid=grid,
        in_specs=[
            pl.BlockSpec((TB, F), lambda i: (i, 0)),    # x tile, auto-pipelined
            resident(w1t), resident(b1c),
            resident(w2t), resident(b2c),
            resident(w3c), resident(b3c),
        ],
        out_specs=pl.BlockSpec((1, TB), lambda i: (0, i)),   # lane-dense output row
        compiler_params=pltpu.CompilerParams(
            dimension_semantics=("parallel",)),
        cost_estimate=pl.CostEstimate(
            flops=flops, transcendentals=0, bytes_accessed=int(bytes_accessed)),
    )(x, w1t, b1c, w2t, b2c, w3c, b3c)

    return out_row[0, :].reshape(B, 1)


def init_params(key, input_size):
    """PyTorch nn.Linear-style init (U[-1/sqrt(fan_in), +1/sqrt(fan_in)]), (in,out) layout."""
    dims = [(input_size, 64), (64, 32), (32, 1)]
    params = {}
    for i, (fan_in, fan_out) in enumerate(dims, start=1):
        key, kw, kb = jax.random.split(key, 3)
        bound = 1.0 / jnp.sqrt(float(fan_in))
        params[f"w{i}"] = jax.random.uniform(
            kw, (fan_in, fan_out), jnp.float32, -bound, bound)
        params[f"b{i}"] = jax.random.uniform(
            kb, (1, fan_out), jnp.float32, -bound, bound)
    return params


def reference_forward(x, params):
    h1 = jnp.maximum(x @ params["w1"] + params["b1"], 0.0)
    h2 = jnp.maximum(h1 @ params["w2"] + params["b2"], 0.0)
    return h2 @ params["w3"] + params["b3"]


if __name__ == "__main__":
    key = jax.random.PRNGKey(0)
    key, kx, kp = jax.random.split(key, 3)

    input_size = 16
    params = init_params(kp, input_size)

    # Small case matching the module's typical use (batch=2).
    x_small = jax.random.normal(kx, (2, input_size), jnp.float32)
    out_small = jax.block_until_ready(task_predictor_forward(x_small, params))
    ref_small = reference_forward(x_small, params)
    assert out_small.shape == (2, 1)
    assert jnp.allclose(out_small, ref_small, atol=3e-2, rtol=3e-2)

    # Ragged batch exercising a multi-step grid with a masked partial last tile
    # (TB=128 -> 3 tiles, last one covers rows 256..299 only).
    key, kx2 = jax.random.split(key)
    x_big = jax.random.normal(kx2, (300, input_size), jnp.float32)
    out_big = jax.block_until_ready(
        task_predictor_forward(x_big, params, tb_max=128))
    ref_big = reference_forward(x_big, params)
    assert out_big.shape == (300, 1)
    assert jnp.allclose(out_big, ref_big, atol=3e-2, rtol=3e-2)

    print("KERNEL_OK")
</pallas_src>

<mosaic_0001>
module attributes {stable_mosaic.version = 11 : i64} {
  func.func @_mlp_kernel(%arg0: i32, %arg1: memref<128x16xf32, #tpu.memory_space<vmem>>, %arg2: memref<64x16xbf16, #tpu.memory_space<vmem>>, %arg3: memref<64x1xf32, #tpu.memory_space<vmem>>, %arg4: memref<32x64xbf16, #tpu.memory_space<vmem>>, %arg5: memref<32x1xf32, #tpu.memory_space<vmem>>, %arg6: memref<32x1xf32, #tpu.memory_space<vmem>>, %arg7: memref<1x1xf32, #tpu.memory_space<vmem>>, %arg8: memref<1x128xf32, #tpu.memory_space<vmem>>) attributes {dimension_semantics = [#tpu.dimension_semantics<parallel>], iteration_bounds = array<i64: 1>, scalar_prefetch = 0 : i64, scratch_operands = 0 : i64, tpu.core_type = #tpu.core_type<tc>, window_params = [{transform_indices = @transform_0, window_bounds = array<i64: 128, 16>}, {pipeline_mode = #tpu.pipeline_mode<synchronous>, transform_indices = @transform_1, window_bounds = array<i64: 64, 16>}, {pipeline_mode = #tpu.pipeline_mode<synchronous>, transform_indices = @transform_2, window_bounds = array<i64: 64, 1>}, {pipeline_mode = #tpu.pipeline_mode<synchronous>, transform_indices = @transform_3, window_bounds = array<i64: 32, 64>}, {pipeline_mode = #tpu.pipeline_mode<synchronous>, transform_indices = @transform_4, window_bounds = array<i64: 32, 1>}, {pipeline_mode = #tpu.pipeline_mode<synchronous>, transform_indices = @transform_5, window_bounds = array<i64: 32, 1>}, {pipeline_mode = #tpu.pipeline_mode<synchronous>, transform_indices = @transform_6, window_bounds = array<i64: 1, 1>}, {transform_indices = @transform_7, window_bounds = array<i64: 1, 128>}]} {
    %c0 = arith.constant 0 : index
    %c0_0 = arith.constant 0 : index
    %0 = vector.load %arg1[%c0, %c0_0] : memref<128x16xf32, #tpu.memory_space<vmem>>, vector<128x16xf32>
    %1 = arith.truncf %0 : vector<128x16xf32> to vector<128x16xbf16>
    %c0_1 = arith.constant 0 : index
    %c0_2 = arith.constant 0 : index
    %2 = vector.load %arg2[%c0_1, %c0_2] : memref<64x16xbf16, #tpu.memory_space<vmem>>, vector<64x16xbf16>
    %cst = arith.constant dense<0.000000e+00> : vector<64x128xf32>
    %3 = tpu.matmul %2, %1, %cst {dimension_numbers = #tpu.dot_dimension_numbers<[1], [1], [0], [0], [0, 0, 1, 0], [], []>} : vector<64x16xbf16>, vector<128x16xbf16>, vector<64x128xf32> -> vector<64x128xf32>
    %c0_3 = arith.constant 0 : index
    %c0_4 = arith.constant 0 : index
    %4 = vector.load %arg3[%c0_3, %c0_4] : memref<64x1xf32, #tpu.memory_space<vmem>>, vector<64x1xf32>
    %5 = vector.broadcast %4 : vector<64x1xf32> to vector<64x128xf32>
    %6 = arith.addf %3, %5 : vector<64x128xf32>
    %cst_5 = arith.constant 0.000000e+00 : f32
    %7 = vector.broadcast %cst_5 : f32 to vector<64x128xf32>
    %8 = arith.maximumf %6, %7 : vector<64x128xf32>
    %c0_6 = arith.constant 0 : index
    %c0_7 = arith.constant 0 : index
    %9 = vector.load %arg4[%c0_6, %c0_7] : memref<32x64xbf16, #tpu.memory_space<vmem>>, vector<32x64xbf16>
    %10 = arith.truncf %8 : vector<64x128xf32> to vector<64x128xbf16>
    %cst_8 = arith.constant dense<0.000000e+00> : vector<32x128xf32>
    %11 = tpu.matmul %9, %10, %cst_8 {dimension_numbers = #tpu.dot_dimension_numbers<[1], [0], [0], [1], [0, 0, 1, 1], [], []>} : vector<32x64xbf16>, vector<64x128xbf16>, vector<32x128xf32> -> vector<32x128xf32>
    %c0_9 = arith.constant 0 : index
    %c0_10 = arith.constant 0 : index
    %12 = vector.load %arg5[%c0_9, %c0_10] : memref<32x1xf32, #tpu.memory_space<vmem>>, vector<32x1xf32>
    %13 = vector.broadcast %12 : vector<32x1xf32> to vector<32x128xf32>
    %14 = arith.addf %11, %13 : vector<32x128xf32>
    %cst_11 = arith.constant 0.000000e+00 : f32
    %15 = vector.broadcast %cst_11 : f32 to vector<32x128xf32>
    %16 = arith.maximumf %14, %15 : vector<32x128xf32>
    %c0_12 = arith.constant 0 : index
    %c0_13 = arith.constant 0 : index
    %17 = vector.load %arg6[%c0_12, %c0_13] : memref<32x1xf32, #tpu.memory_space<vmem>>, vector<32x1xf32>
    %18 = vector.broadcast %17 : vector<32x1xf32> to vector<32x128xf32>
    %19 = arith.mulf %16, %18 : vector<32x128xf32>
    %cst_14 = arith.constant dense<0.000000e+00> : vector<128xf32>
    %20 = vector.multi_reduction <add>, %19, %cst_14 [0] : vector<32x128xf32> to vector<128xf32>
    %21 = vector.shape_cast %20 : vector<128xf32> to vector<1x128xf32>
    %c0_15 = arith.constant 0 : index
    %c0_16 = arith.constant 0 : index
    %22 = vector.load %arg7[%c0_15, %c0_16] : memref<1x1xf32, #tpu.memory_space<vmem>>, vector<1x1xf32>
    %23 = vector.broadcast %22 : vector<1x1xf32> to vector<1x128xf32>
    %24 = arith.addf %21, %23 : vector<1x128xf32>
    %c0_17 = arith.constant 0 : index
    %c0_18 = arith.constant 0 : index
    %25 = vector.load %arg8[%c0_17, %c0_18] : memref<1x128xf32, #tpu.memory_space<vmem>>, vector<1x128xf32>
    tpu.vector_store %arg8[%c0_17, %c0_18], %24 {strides = array<i32>} : memref<1x128xf32, #tpu.memory_space<vmem>>, vector<1x128xf32>,
    return
  }
  func.func @transform_0(%arg0: i32) -> (i32, i32) {
    %c0_i32 = arith.constant 0 : i32
    %c0_i32_0 = arith.constant 0 : i32
    return %arg0, %c0_i32 : i32, i32
  }
  func.func @transform_1(%arg0: i32) -> (i32, i32) {
    %c0_i32 = arith.constant 0 : i32
    %c0_i32_0 = arith.constant 0 : i32
    %c0_i32_1 = arith.constant 0 : i32
    return %c0_i32, %c0_i32_0 : i32, i32
  }
  func.func @transform_2(%arg0: i32) -> (i32, i32) {
    %c0_i32 = arith.constant 0 : i32
    %c0_i32_0 = arith.constant 0 : i32
    %c0_i32_1 = arith.constant 0 : i32
    return %c0_i32, %c0_i32_0 : i32, i32
  }
  func.func @transform_3(%arg0: i32) -> (i32, i32) {
    %c0_i32 = arith.constant 0 : i32
    %c0_i32_0 = arith.constant 0 : i32
    %c0_i32_1 = arith.constant 0 : i32
    return %c0_i32, %c0_i32_0 : i32, i32
  }
  func.func @transform_4(%arg0: i32) -> (i32, i32) {
    %c0_i32 = arith.constant 0 : i32
    %c0_i32_0 = arith.constant 0 : i32
    %c0_i32_1 = arith.constant 0 : i32
    return %c0_i32, %c0_i32_0 : i32, i32
  }
  func.func @transform_5(%arg0: i32) -> (i32, i32) {
    %c0_i32 = arith.constant 0 : i32
    %c0_i32_0 = arith.constant 0 : i32
    %c0_i32_1 = arith.constant 0 : i32
    return %c0_i32, %c0_i32_0 : i32, i32
  }
  func.func @transform_6(%arg0: i32) -> (i32, i32) {
    %c0_i32 = arith.constant 0 : i32
    %c0_i32_0 = arith.constant 0 : i32
    %c0_i32_1 = arith.constant 0 : i32
    return %c0_i32, %c0_i32_0 : i32, i32
  }
  func.func @transform_7(%arg0: i32) -> (i32, i32) {
    %c0_i32 = arith.constant 0 : i32
    %c0_i32_0 = arith.constant 0 : i32
    return %c0_i32, %arg0 : i32, i32
  }
}

</mosaic_0001>

<llo_original>
// kernel: tpu_custom_call.1
$region0: #{tpu_custom_call.1}
  #allocation0 [shape = 'u32[]', space=smem, size = 0x4, offset = 0x4, fixed_abs, tag = 'smem constant byte address 0x4 - core index']
  #allocation1 [shape = 'u32[72,128]{1,0:T(1,128)}', space=vmem, size = 0x9000, scoped, tag = 'internal scratch']
  #allocation2 [shape = 'f32[1,1]{1,0:T(1,128)S(1)}', space=vmem, size = 0x200, scoped, tag = 'scoped memory for tpu_custom_call.1']
  %s0 = inlined_call_operand.vmem [shape: f32[2,16], index: 0, kind: input, shape index: {}]
  %s1 = inlined_call_operand.vmem [shape: bf16[64,16], index: 1, kind: input, shape index: {}]
  %s2 = inlined_call_operand.vmem [shape: f32[64,1], index: 2, kind: input, shape index: {}]
  %s3 = inlined_call_operand.vmem [shape: bf16[32,64], index: 3, kind: input, shape index: {}]
  %s4 = inlined_call_operand.vmem [shape: f32[32,1], index: 4, kind: input, shape index: {}]
  %s5 = inlined_call_operand.vmem [shape: f32[32,1], index: 5, kind: input, shape index: {}]
  %s6 = inlined_call_operand.<no memory space> [shape: f32[1,1], index: 6, kind: input, shape index: {}]
  %s7 = inlined_call_operand.hbm [shape: f32[1,2], index: 7, kind: output, shape index: {}]
  %s8 = sld [smem:[#allocation0]]
  $region38: #{tpu_custom_call.1} parent=0
    _
  %s10 = ssub.s32 1, %s8
  %s11 = scalar_select 0, %s10, %s8
  %v12 = vstv %s6
  %13 = vst [vmem:[#allocation2] sm:$0x1] %v12
  $region1: #{tpu_custom_call.1} parent=0
    #allocation3 [shape = 'u8[512]{0}', space=vmem, size = 0x400, scoped, tag = 'output window, operand 0, single buffered']
    #allocation4 [shape = 's32[1]{0}', space=sflag, size = 0x4, scoped, tag = 'scoped memory for tpu_custom_call.1']
    %14 = vsyncpa [#allocation4], 0
    // Predicated region
    $region2: #{tpu_custom_call.1} parent=1 // pred_check
      _
    $region3: #{tpu_custom_call.1} parent=1 // pred_check_branch
      %16 = sbr.rel (0) target = $region5
    $region4: #{tpu_custom_call.1} parent=1 // pred_region
      _
    $region5: #{tpu_custom_call.1} parent=1 // pred_fallthru
      _
    // Predicated region
    $region6: #{tpu_custom_call.1} parent=1 // pred_check
      _
    $region7: #{tpu_custom_call.1} parent=1 // pred_check_branch
      %18 = sbr.rel (0) target = $region9
    $region8: #{tpu_custom_call.1} parent=1 // pred_region
      _
    $region9: #{tpu_custom_call.1} parent=1 // pred_fallthru
      _
    // Predicated region
    $region10: #{tpu_custom_call.1} parent=1 // pred_check
      _
    $region11: #{tpu_custom_call.1} parent=1 // pred_check_branch
      %20 = sbr.rel (0) target = $region13
    $region12: #{tpu_custom_call.1} parent=1 // pred_region
      _
    $region13: #{tpu_custom_call.1} parent=1 // pred_fallthru
      _
    // Predicated region
    $region14: #{tpu_custom_call.1} parent=1 // pred_check
      _
    $region15: #{tpu_custom_call.1} parent=1 // pred_check_branch
      %22 = sbr.rel (0) target = $region17
    $region16: #{tpu_custom_call.1} parent=1 // pred_region
      _
    $region17: #{tpu_custom_call.1} parent=1 // pred_fallthru
      _
    // Predicated region
    $region18: #{tpu_custom_call.1} parent=1 // pred_check
      _
    $region19: #{tpu_custom_call.1} parent=1 // pred_check_branch
      %24 = sbr.rel (0) target = $region21
    $region20: #{tpu_custom_call.1} parent=1 // pred_region
      _
    $region21: #{tpu_custom_call.1} parent=1 // pred_fallthru
      _
    // Predicated region
    $region22: #{tpu_custom_call.1} parent=1 // pred_check
      _
    $region23: #{tpu_custom_call.1} parent=1 // pred_check_branch
      %26 = sbr.rel (0) target = $region25
    $region24: #{tpu_custom_call.1} parent=1 // pred_region
      _
    $region25: #{tpu_custom_call.1} parent=1 // pred_fallthru
      _
    // Predicated region
    $region26: #{tpu_custom_call.1} parent=1 // pred_check
      _
    $region27: #{tpu_custom_call.1} parent=1 // pred_check_branch
      %28 = sbr.rel (0) target = $region29
    $region28: #{tpu_custom_call.1} parent=1 // pred_region
      _
    $region29: #{tpu_custom_call.1} parent=1 // pred_fallthru
      _
    %v30 = vld [vmem:[%s0] sm:$0xff]
    %v31 = vld [vmem:[%s0 + $0x8] sm:$0xff]
    %v32 = vld [vmem:[%s0 + $0x10] sm:$0xff]
    %v33 = vld [vmem:[%s0 + $0x18] sm:$0xff]
    %v34 = vld [vmem:[%s0 + $0x20] sm:$0xff]
    %v35 = vld [vmem:[%s0 + $0x28] sm:$0xff]
    %v36 = vld [vmem:[%s0 + $0x30] sm:$0xff]
    %v37 = vld [vmem:[%s0 + $0x38] sm:$0xff]
    %v38 = vld [vmem:[%s0 + $0x40] sm:$0xff]
    %v39 = vld [vmem:[%s0 + $0x48] sm:$0xff]
    %v40 = vld [vmem:[%s0 + $0x50] sm:$0xff]
    %v41 = vld [vmem:[%s0 + $0x58] sm:$0xff]
    %v42 = vld [vmem:[%s0 + $0x60] sm:$0xff]
    %v43 = vld [vmem:[%s0 + $0x68] sm:$0xff]
    %v44 = vld [vmem:[%s0 + $0x70] sm:$0xff]
    %v45 = vld [vmem:[%s0 + $0x78] sm:$0xff]
    %v46 = vpack.c.bf16 %v31, %v30
    %v47 = vpack.c.bf16 %v33, %v32
    %v48 = vpack.c.bf16 %v35, %v34
    %v49 = vpack.c.bf16 %v37, %v36
    %v50 = vpack.c.bf16 %v39, %v38
    %v51 = vpack.c.bf16 %v41, %v40
    %v52 = vpack.c.bf16 %v43, %v42
    %v53 = vpack.c.bf16 %v45, %v44
    %v54 = vld [vmem:[%s1] sm:$0xf]
    %v55 = vld [vmem:[%s1 + $0x4] sm:$0xf]
    %v56 = vld [vmem:[%s1 + $0x8] sm:$0xf]
    %v57 = vld [vmem:[%s1 + $0xc] sm:$0xf]
    %v58 = vld [vmem:[%s1 + $0x10] sm:$0xf]
    %v59 = vld [vmem:[%s1 + $0x14] sm:$0xf]
    %v60 = vld [vmem:[%s1 + $0x18] sm:$0xf]
    %v61 = vld [vmem:[%s1 + $0x1c] sm:$0xf]
    %v62 = vld [vmem:[%s2] sm:$0xff]
    %v63 = vld [vmem:[%s2 + $0x8] sm:$0xff]
    %v64 = vld [vmem:[%s2 + $0x10] sm:$0xff]
    %v65 = vld [vmem:[%s2 + $0x18] sm:$0xff]
    %v66 = vld [vmem:[%s2 + $0x20] sm:$0xff]
    %v67 = vld [vmem:[%s2 + $0x28] sm:$0xff]
    %v68 = vld [vmem:[%s2 + $0x30] sm:$0xff]
    %v69 = vld [vmem:[%s2 + $0x38] sm:$0xff]
    %71 = vset.pattern.permute.xlu0 0
    %72 = vperm.xlu0 %71, %v62
    %v73 = vpop.permute.xlu0 %72
    %76 = vset.pattern.permute.xlu0 0
    %77 = vperm.xlu0 %76, %v63
    %v78 = vpop.permute.xlu0 %77
    %81 = vset.pattern.permute.xlu0 0
    %82 = vperm.xlu0 %81, %v64
    %v83 = vpop.permute.xlu0 %82
    %86 = vset.pattern.permute.xlu0 0
    %87 = vperm.xlu0 %86, %v65
    %v88 = vpop.permute.xlu0 %87
    %91 = vset.pattern.permute.xlu0 0
    %92 = vperm.xlu0 %91, %v66
    %v93 = vpop.permute.xlu0 %92
    %96 = vset.pattern.permute.xlu0 0
    %97 = vperm.xlu0 %96, %v67
    %v98 = vpop.permute.xlu0 %97
    %101 = vset.pattern.permute.xlu0 0
    %102 = vperm.xlu0 %101, %v68
    %v103 = vpop.permute.xlu0 %102
    %106 = vset.pattern.permute.xlu0 0
    %107 = vperm.xlu0 %106, %v69
    %v108 = vpop.permute.xlu0 %107
    %v118 = vunpack.c.l.b16 %v54
    %v119 = vunpack.c.l.b16 %v55
    %v120 = vunpack.c.l.b16 %v56
    %v121 = vunpack.c.l.b16 %v57
    %v122 = vunpack.c.l.b16 %v58
    %v123 = vunpack.c.l.b16 %v59
    %v124 = vunpack.c.l.b16 %v60
    %v125 = vunpack.c.l.b16 %v61
    %v126 = vpack.c.b16 %v119, %v118
    %v127 = vpack.c.b16 %v121, %v120
    %v128 = vpack.c.b16 %v123, %v122
    %v129 = vpack.c.b16 %v125, %v124
    %vm130 = vcmask 130048
    %v132 = vsel %vm130, %v126, 0
    %v135 = vsel %vm130, %v127, 0
    %v138 = vsel %vm130, %v128, 0
    %v141 = vsel %vm130, %v129, 0
    %v144 = vsel %vm130, %v46, 0
    %v147 = vsel %vm130, %v47, 0
    %v150 = vsel %vm130, %v48, 0
    %v153 = vsel %vm130, %v49, 0
    %v156 = vsel %vm130, %v50, 0
    %v159 = vsel %vm130, %v51, 0
    %v162 = vsel %vm130, %v52, 0
    %v165 = vsel %vm130, %v53, 0
    %167 = vmatpush.bf16.xpose.msra.mxu0 %v165
    %168 = vmatpush.bf16.xpose.msra.mxu0 %v162
    %169 = vmatpush.bf16.xpose.msra.mxu0 %v159
    %170 = vmatpush.bf16.xpose.msra.mxu0 %v156
    %171 = vmatpush.bf16.xpose.msra.mxu0 %v153
    %172 = vmatpush.bf16.xpose.msra.mxu0 %v150
    %173 = vmatpush.bf16.xpose.msra.mxu0 %v147
    %174 = vmatpush.bf16.xpose.msra.mxu0 %v144
    %175 = vmatmul.bf16.gmra.mxu0 %v132
    %v176 = vpop.f32.mrf.mxu0
    %v177 = vadd.f32 %v73, %v176
    %v178 = vpop.f32.mrf.mxu0
    %v179 = vadd.f32 %v78, %v178
    %180 = vmatmul.bf16.gmra.mxu0 %v135
    %v181 = vpop.f32.mrf.mxu0
    %v182 = vadd.f32 %v83, %v181
    %v183 = vpop.f32.mrf.mxu0
    %v184 = vadd.f32 %v88, %v183
    %185 = vmatmul.bf16.gmra.mxu0 %v138
    %v186 = vpop.f32.mrf.mxu0
    %v187 = vadd.f32 %v93, %v186
    %v188 = vpop.f32.mrf.mxu0
    %v189 = vadd.f32 %v98, %v188
    %190 = vmatmul.bf16.gmra.mxu0 %v141
    %v191 = vpop.f32.mrf.mxu0
    %v192 = vadd.f32 %v103, %v191
    %v193 = vpop.f32.mrf.mxu0
    %v194 = vadd.f32 %v108, %v193
    %195 = vdwg.mxu0
    %v196 = vmax.f32 %v177, 0.0
    %v197 = vmax.f32 %v179, 0.0
    %v198 = vmax.f32 %v182, 0.0
    %v199 = vmax.f32 %v184, 0.0
    %v200 = vmax.f32 %v187, 0.0
    %v201 = vmax.f32 %v189, 0.0
    %v202 = vmax.f32 %v192, 0.0
    %v203 = vmax.f32 %v194, 0.0
    %v204 = vld [vmem:[%s3] sm:$0xf]
    %v205 = vld [vmem:[%s3 + $0x4] sm:$0xf]
    %v206 = vld [vmem:[%s3 + $0x8] sm:$0xf]
    %v207 = vld [vmem:[%s3 + $0xc] sm:$0xf]
    %v208 = vpack.c.bf16 %v197, %v196
    %v209 = vpack.c.bf16 %v199, %v198
    %v210 = vpack.c.bf16 %v201, %v200
    %v211 = vpack.c.bf16 %v203, %v202
    %v212 = vld [vmem:[%s4] sm:$0xff]
    %v213 = vld [vmem:[%s4 + $0x8] sm:$0xff]
    %v214 = vld [vmem:[%s4 + $0x10] sm:$0xff]
    %v215 = vld [vmem:[%s4 + $0x18] sm:$0xff]
    %217 = vset.pattern.permute.xlu0 0
    %218 = vperm.xlu0 %217, %v212
    %v219 = vpop.permute.xlu0 %218
    %222 = vset.pattern.permute.xlu0 0
    %223 = vperm.xlu0 %222, %v213
    %v224 = vpop.permute.xlu0 %223
    %227 = vset.pattern.permute.xlu0 0
    %228 = vperm.xlu0 %227, %v214
    %v229 = vpop.permute.xlu0 %228
    %232 = vset.pattern.permute.xlu0 0
    %233 = vperm.xlu0 %232, %v215
    %v234 = vpop.permute.xlu0 %233
    %v240 = vunpack.c.l.b16 %v204
    %v241 = vunpack.c.l.b16 %v205
    %v242 = vunpack.c.l.b16 %v206
    %v243 = vunpack.c.l.b16 %v207
    %v244 = vpack.c.b16 %v241, %v240
    %v245 = vpack.c.b16 %v243, %v242
    %vm246 = vcmask 523264
    %v248 = vsel %vm246, %v244, 0
    %v251 = vsel %vm246, %v245, 0
    %253 = vmatpush.bf16.msra.mxu0 0
    %254 = vmatpush.bf16.msra.mxu0 0
    %255 = vmatpush.bf16.msra.mxu0 0
    %256 = vmatpush.bf16.msra.mxu0 0
    %257 = vmatpush.bf16.msra.mxu0 %v211
    %258 = vmatpush.bf16.msra.mxu0 %v210
    %259 = vmatpush.bf16.msra.mxu0 %v209
    %260 = vmatpush.bf16.msra.mxu0 %v208
    %261 = vmatmul.bf16.gmra.mxu0 %v248
    %v262 = vpop.f32.mrf.mxu0
    %v263 = vadd.f32 %v219, %v262
    %v264 = vpop.f32.mrf.mxu0
    %v265 = vadd.f32 %v224, %v264
    %266 = vmatmul.bf16.gmra.mxu0 %v251
    %v267 = vpop.f32.mrf.mxu0
    %v268 = vadd.f32 %v229, %v267
    %v269 = vpop.f32.mrf.mxu0
    %v270 = vadd.f32 %v234, %v269
    %271 = vdwg.mxu0
    %v272 = vmax.f32 %v263, 0.0
    %v273 = vmax.f32 %v265, 0.0
    %v274 = vmax.f32 %v268, 0.0
    %v275 = vmax.f32 %v270, 0.0
    %v276 = vld [vmem:[%s5] sm:$0xff]
    %v277 = vld [vmem:[%s5 + $0x8] sm:$0xff]
    %v278 = vld [vmem:[%s5 + $0x10] sm:$0xff]
    %v279 = vld [vmem:[%s5 + $0x18] sm:$0xff]
    %281 = vset.pattern.permute.xlu0 0
    %282 = vperm.xlu0 %281, %v276
    %v283 = vpop.permute.xlu0 %282
    %286 = vset.pattern.permute.xlu0 0
    %287 = vperm.xlu0 %286, %v277
    %v288 = vpop.permute.xlu0 %287
    %291 = vset.pattern.permute.xlu0 0
    %292 = vperm.xlu0 %291, %v278
    %v293 = vpop.permute.xlu0 %292
    %296 = vset.pattern.permute.xlu0 0
    %297 = vperm.xlu0 %296, %v279
    %v298 = vpop.permute.xlu0 %297
    %v300 = vmul.f32 %v272, %v283
    %v301 = vmul.f32 %v273, %v288
    %v302 = vmul.f32 %v274, %v293
    %v303 = vmul.f32 %v275, %v298
    %v304 = vadd.f32 %v300, %v301
    %v305 = vadd.f32 %v304, %v302
    %v306 = vadd.f32 %v305, %v303
    %v307 = vrot.slane %v306, 4
    %v308 = vadd.f32 %v306, %v307
    %v309 = vrot.slane %v308, 2
    %v310 = vadd.f32 %v308, %v309
    %v311 = vrot.slane %v310, 1
    %v312 = vadd.f32 %v310, %v311
    %v313 = vld [vmem:[#allocation2] sm:$0x1]
    %315 = vset.pattern.permute.xlu0 0
    %316 = vperm.xlu0 %315, %v313
    %v317 = vpop.permute.xlu0 %316
    %v319 = vperm.slane %v317, 0
    %v320 = vadd.f32 %v312, %v319
    %321 = vst [vmem:[#allocation3] sm:$0x1] %v320
    // Predicated region
    $region30: #{tpu_custom_call.1} parent=1 // pred_check
      _
    $region31: #{tpu_custom_call.1} parent=1 // pred_check_branch
      %323 = sbr.rel (0) target = $region33
    $region32: #{tpu_custom_call.1} parent=1 // pred_region
      %325 = vsyncadd [#allocation4], 0
      %s327 = sshll.u32 [#allocation3], 4
      %s328 = int_to_ptr.vmem [resolvable:$true] %s327
      %s329 = sshll.u32 %s7, 4
      %s330 = int_to_ptr.hbm [resolvable:$true] %s329
      %332 = dma.vmem_to_hbm [thread:$0]  %s328, 16, %s330, [#allocation4]
    $region33: #{tpu_custom_call.1} parent=1 // pred_fallthru
      _
    // Predicated region
    $region34: #{tpu_custom_call.1} parent=1 // pred_check
      _
    $region35: #{tpu_custom_call.1} parent=1 // pred_check_branch
      %334 = sbr.rel (0) target = $region37
    $region36: #{tpu_custom_call.1} parent=1 // pred_region
      %336 = dma.done [#allocation4], 16
    $region37: #{tpu_custom_call.1} parent=1 // pred_fallthru
      _
    %337 = vsyncpa [#allocation4], 1

</llo_original>
